<compile_context>
chip_gen: v6e
topology: v6e:2x2x1
jax: 0.10.0
libtpu: 0.0.40
codegen_flags: <defaults>
</compile_context>

<pallas_src>
import jax
import jax.numpy as jnp
from jax.experimental import pallas as pl
from jax.experimental.pallas import tpu as pltpu

HIDDEN = 32
INPUT_SIZE = 1


def rnn_kernel(x_ref, h0_ref, whh_ref, slab_ref, out_ref, hlast_ref, buf_ref):
    T = buf_ref.shape[0]

    # Packed parameter slab rows (static slices -> zero-cost views).
    wih = slab_ref[0:1, :]        # (1, H)   Wih^T row (INPUT_SIZE == 1)
    b = slab_ref[1:2, :]          # (1, H)   b_ih + b_hh
    wout = slab_ref[2:3, :]       # (1, H)   output projection weights
    bout = slab_ref[3:4, 0:1]     # (1, 1)   output projection bias

    # Input projection + combined bias, hoisted out of the recurrence:
    #   buf[t] = x[t] * Wih^T + (b_ih + b_hh)        -> (T, Bp, H)  (pure VPU)
    buf_ref[...] = x_ref[...][..., None] * wih + b

    # Loop-invariant recurrence weight, read once.
    whh = whh_ref[...]            # (H, H)

    # Fully-unrolled serial recurrence (static T): only the (Bp,H)@(H,H)
    # matmul + tanh sit on the dependent chain; buf[t] is consumed and then
    # overwritten in place with h[t] (merged pre/history buffer).
    h = h0_ref[...]
    for t in range(T):
        h = jnp.tanh(buf_ref[t]
                     + jnp.dot(h, whh, preferred_element_type=jnp.float32))
        buf_ref[t] = h

    # Final hidden state, written exactly once.
    hlast_ref[...] = h

    # Output projection Linear(H -> 1), hoisted out of the loop: one lane
    # reduction over H for all timesteps, one dense (T, Bp) store.
    out_ref[...] = jnp.sum(buf_ref[...] * wout, axis=-1) + bout


def rnn_forward(x, h_state, params):
    """x: (B, T, 1) f32, h_state: (1, B, HIDDEN) f32 or None."""
    B, T, _ = x.shape
    Bp = ((B + 7) // 8) * 8                         # pad batch to sublane multiple

    if h_state is None:
        h0 = jnp.zeros((B, HIDDEN), jnp.float32)
    else:
        h0 = h_state[0].astype(jnp.float32)

    # Time-major, batch-padded, lane-dense input (no trailing dim of 1).
    x_tm = jnp.transpose(x.astype(jnp.float32)[:, :, 0], (1, 0))   # (T, B)
    x_tm = jnp.pad(x_tm, ((0, 0), (0, Bp - B)))                     # (T, Bp)
    h0_p = jnp.pad(h0, ((0, Bp - B), (0, 0)))                       # (Bp, H)

    whh_t = params["w_hh"].T.astype(jnp.float32)                    # (H, H)

    # Pack the four tiny parameter arrays into one (8, H) slab.
    slab = jnp.zeros((8, HIDDEN), jnp.float32)
    slab = slab.at[0].set(params["w_ih"][:, 0].astype(jnp.float32))           # Wih^T row
    slab = slab.at[1].set((params["b_ih"] + params["b_hh"]).astype(jnp.float32))
    slab = slab.at[2].set(params["w_out"][0].astype(jnp.float32))             # Wout row
    slab = slab.at[3, 0].set(params["b_out"][0].astype(jnp.float32))          # b_out

    vmem = pl.BlockSpec(memory_space=pltpu.MemorySpace.VMEM)

    out_tb, h_last = pl.pallas_call(
        rnn_kernel,
        out_shape=(
            jax.ShapeDtypeStruct((T, Bp), jnp.float32),        # per-step outputs (dense slab)
            jax.ShapeDtypeStruct((Bp, HIDDEN), jnp.float32),   # final hidden state
        ),
        in_specs=[vmem] * 4,
        out_specs=[vmem, vmem],
        scratch_shapes=[
            pltpu.VMEM((T, Bp, HIDDEN), jnp.float32),   # merged pre-activation / h history
        ],
    )(x_tm, h0_p, whh_t, slab)

    outs = jnp.transpose(out_tb[:, :B])[:, :, None]    # (B, T, 1), batch_first
    h_new = h_last[:B][None]                           # (1, B, H)
    return outs, h_new


def init_params(key):
    """Deterministic init mimicking PyTorch's U(-1/sqrt(H), 1/sqrt(H))."""
    ks = jax.random.split(key, 6)
    bound = 1.0 / jnp.sqrt(jnp.float32(HIDDEN))
    u = lambda k, shape: jax.random.uniform(k, shape, jnp.float32, -bound, bound)
    return {
        "w_ih": u(ks[0], (HIDDEN, INPUT_SIZE)),
        "w_hh": u(ks[1], (HIDDEN, HIDDEN)),
        "b_ih": u(ks[2], (HIDDEN,)),
        "b_hh": u(ks[3], (HIDDEN,)),
        "w_out": u(ks[4], (1, HIDDEN)),
        "b_out": u(ks[5], (1,)),
    }


def rnn_reference(x, h_state, params):
    """Pure-JAX reference (lax.scan) for verification."""
    B = x.shape[0]
    h0 = jnp.zeros((B, HIDDEN), jnp.float32) if h_state is None else h_state[0]
    x_tm = jnp.transpose(x, (1, 0, 2))

    def step(h, x_t):
        h_new = jnp.tanh(x_t @ params["w_ih"].T + params["b_ih"]
                         + h @ params["w_hh"].T + params["b_hh"])
        o = h_new @ params["w_out"].T + params["b_out"]
        return h_new, o

    h_last, outs_tm = jax.lax.scan(step, h0, x_tm)
    return jnp.transpose(outs_tm, (1, 0, 2)), h_last[None]


if __name__ == "__main__":
    key = jax.random.PRNGKey(0)
    kp, kx = jax.random.split(key)
    params = init_params(kp)

    B, T = 2, 8
    x = jax.random.normal(kx, (B, T, INPUT_SIZE), jnp.float32)
    h_state = None  # matches the module's global default

    outs, h_new = rnn_forward(x, h_state, params)
    jax.block_until_ready((outs, h_new))

    ref_outs, ref_h = rnn_reference(x, h_state, params)
    assert outs.shape == (B, T, 1) and h_new.shape == (1, B, HIDDEN)
    assert jnp.allclose(outs, ref_outs, atol=1e-5)
    assert jnp.allclose(h_new, ref_h, atol=1e-5)

    print("KERNEL_OK")
</pallas_src>

<mosaic_0001>
module attributes {stable_mosaic.version = 11 : i64} {
  func.func @rnn_kernel(%arg0: memref<8x8xf32, #tpu.memory_space<vmem>>, %arg1: memref<8x32xf32, #tpu.memory_space<vmem>>, %arg2: memref<32x32xf32, #tpu.memory_space<vmem>>, %arg3: memref<8x32xf32, #tpu.memory_space<vmem>>, %arg4: memref<8x8xf32, #tpu.memory_space<vmem>>, %arg5: memref<8x32xf32, #tpu.memory_space<vmem>>, %arg6: memref<8x8x32xf32, #tpu.memory_space<vmem>>) attributes {dimension_semantics = [], scalar_prefetch = 0 : i64, scratch_operands = 1 : i64, tpu.core_type = #tpu.core_type<tc>} {
    %c0 = arith.constant 0 : index
    %c0_0 = arith.constant 0 : index
    %0 = vector.load %arg3[%c0, %c0_0] : memref<8x32xf32, #tpu.memory_space<vmem>>, vector<1x32xf32>
    %c1 = arith.constant 1 : index
    %c0_1 = arith.constant 0 : index
    %1 = vector.load %arg3[%c1, %c0_1] : memref<8x32xf32, #tpu.memory_space<vmem>>, vector<1x32xf32>
    %c2 = arith.constant 2 : index
    %c0_2 = arith.constant 0 : index
    %2 = vector.load %arg3[%c2, %c0_2] : memref<8x32xf32, #tpu.memory_space<vmem>>, vector<1x32xf32>
    %c3 = arith.constant 3 : index
    %c0_3 = arith.constant 0 : index
    %3 = vector.load %arg3[%c3, %c0_3] : memref<8x32xf32, #tpu.memory_space<vmem>>, vector<1x1xf32>
    %c0_4 = arith.constant 0 : index
    %c0_5 = arith.constant 0 : index
    %4 = vector.load %arg0[%c0_4, %c0_5] : memref<8x8xf32, #tpu.memory_space<vmem>>, vector<8x8xf32>
    %5 = vector.shape_cast %4 : vector<8x8xf32> to vector<8x8x1xf32>
    %6 = vector.shape_cast %0 : vector<1x32xf32> to vector<1x1x32xf32>
    %7 = vector.broadcast %5 : vector<8x8x1xf32> to vector<8x8x32xf32>
    %8 = vector.broadcast %6 : vector<1x1x32xf32> to vector<8x8x32xf32>
    %9 = arith.mulf %7, %8 : vector<8x8x32xf32>
    %10 = vector.shape_cast %1 : vector<1x32xf32> to vector<1x1x32xf32>
    %11 = vector.broadcast %10 : vector<1x1x32xf32> to vector<8x8x32xf32>
    %12 = arith.addf %9, %11 : vector<8x8x32xf32>
    %c0_6 = arith.constant 0 : index
    %c0_7 = arith.constant 0 : index
    %c0_8 = arith.constant 0 : index
    %13 = vector.load %arg6[%c0_6, %c0_7, %c0_8] : memref<8x8x32xf32, #tpu.memory_space<vmem>>, vector<8x8x32xf32>
    tpu.vector_store %arg6[%c0_6, %c0_7, %c0_8], %12 {strides = array<i32>} : memref<8x8x32xf32, #tpu.memory_space<vmem>>, vector<8x8x32xf32>,
    %c0_9 = arith.constant 0 : index
    %c0_10 = arith.constant 0 : index
    %14 = vector.load %arg2[%c0_9, %c0_10] : memref<32x32xf32, #tpu.memory_space<vmem>>, vector<32x32xf32>
    %c0_11 = arith.constant 0 : index
    %c0_12 = arith.constant 0 : index
    %15 = vector.load %arg1[%c0_11, %c0_12] : memref<8x32xf32, #tpu.memory_space<vmem>>, vector<8x32xf32>
    %c0_13 = arith.constant 0 : index
    %c0_14 = arith.constant 0 : index
    %c0_15 = arith.constant 0 : index
    %16 = vector.load %arg6[%c0_13, %c0_14, %c0_15] : memref<8x8x32xf32, #tpu.memory_space<vmem>>, vector<1x8x32xf32>
    %17 = vector.shape_cast %16 : vector<1x8x32xf32> to vector<8x32xf32>
    %cst = arith.constant dense<0.000000e+00> : vector<8x32xf32>
    %18 = tpu.matmul %15, %14, %cst {dimension_numbers = #tpu.dot_dimension_numbers<[1], [0], [0], [1], [0, 0, 1, 1], [], []>} : vector<8x32xf32>, vector<32x32xf32>, vector<8x32xf32> -> vector<8x32xf32>
    %19 = arith.addf %17, %18 : vector<8x32xf32>
    %20 = math.tanh %19 : vector<8x32xf32>
    %c0_16 = arith.constant 0 : index
    %c0_17 = arith.constant 0 : index
    %c0_18 = arith.constant 0 : index
    %21 = vector.load %arg6[%c0_16, %c0_17, %c0_18] : memref<8x8x32xf32, #tpu.memory_space<vmem>>, vector<1x8x32xf32>
    %22 = vector.shape_cast %21 : vector<1x8x32xf32> to vector<8x32xf32>
    %23 = vector.shape_cast %20 : vector<8x32xf32> to vector<1x8x32xf32>
    tpu.vector_store %arg6[%c0_16, %c0_17, %c0_18], %23 {strides = array<i32>} : memref<8x8x32xf32, #tpu.memory_space<vmem>>, vector<1x8x32xf32>,
    %c1_19 = arith.constant 1 : index
    %c0_20 = arith.constant 0 : index
    %c0_21 = arith.constant 0 : index
    %24 = vector.load %arg6[%c1_19, %c0_20, %c0_21] : memref<8x8x32xf32, #tpu.memory_space<vmem>>, vector<1x8x32xf32>
    %25 = vector.shape_cast %24 : vector<1x8x32xf32> to vector<8x32xf32>
    %cst_22 = arith.constant dense<0.000000e+00> : vector<8x32xf32>
    %26 = tpu.matmul %20, %14, %cst_22 {dimension_numbers = #tpu.dot_dimension_numbers<[1], [0], [0], [1], [0, 0, 1, 1], [], []>} : vector<8x32xf32>, vector<32x32xf32>, vector<8x32xf32> -> vector<8x32xf32>
    %27 = arith.addf %25, %26 : vector<8x32xf32>
    %28 = math.tanh %27 : vector<8x32xf32>
    %c1_23 = arith.constant 1 : index
    %c0_24 = arith.constant 0 : index
    %c0_25 = arith.constant 0 : index
    %29 = vector.load %arg6[%c1_23, %c0_24, %c0_25] : memref<8x8x32xf32, #tpu.memory_space<vmem>>, vector<1x8x32xf32>
    %30 = vector.shape_cast %29 : vector<1x8x32xf32> to vector<8x32xf32>
    %31 = vector.shape_cast %28 : vector<8x32xf32> to vector<1x8x32xf32>
    tpu.vector_store %arg6[%c1_23, %c0_24, %c0_25], %31 {strides = array<i32>} : memref<8x8x32xf32, #tpu.memory_space<vmem>>, vector<1x8x32xf32>,
    %c2_26 = arith.constant 2 : index
    %c0_27 = arith.constant 0 : index
    %c0_28 = arith.constant 0 : index
    %32 = vector.load %arg6[%c2_26, %c0_27, %c0_28] : memref<8x8x32xf32, #tpu.memory_space<vmem>>, vector<1x8x32xf32>
    %33 = vector.shape_cast %32 : vector<1x8x32xf32> to vector<8x32xf32>
    %cst_29 = arith.constant dense<0.000000e+00> : vector<8x32xf32>
    %34 = tpu.matmul %28, %14, %cst_29 {dimension_numbers = #tpu.dot_dimension_numbers<[1], [0], [0], [1], [0, 0, 1, 1], [], []>} : vector<8x32xf32>, vector<32x32xf32>, vector<8x32xf32> -> vector<8x32xf32>
    %35 = arith.addf %33, %34 : vector<8x32xf32>
    %36 = math.tanh %35 : vector<8x32xf32>
    %c2_30 = arith.constant 2 : index
    %c0_31 = arith.constant 0 : index
    %c0_32 = arith.constant 0 : index
    %37 = vector.load %arg6[%c2_30, %c0_31, %c0_32] : memref<8x8x32xf32, #tpu.memory_space<vmem>>, vector<1x8x32xf32>
    %38 = vector.shape_cast %37 : vector<1x8x32xf32> to vector<8x32xf32>
    %39 = vector.shape_cast %36 : vector<8x32xf32> to vector<1x8x32xf32>
    tpu.vector_store %arg6[%c2_30, %c0_31, %c0_32], %39 {strides = array<i32>} : memref<8x8x32xf32, #tpu.memory_space<vmem>>, vector<1x8x32xf32>,
    %c3_33 = arith.constant 3 : index
    %c0_34 = arith.constant 0 : index
    %c0_35 = arith.constant 0 : index
    %40 = vector.load %arg6[%c3_33, %c0_34, %c0_35] : memref<8x8x32xf32, #tpu.memory_space<vmem>>, vector<1x8x32xf32>
    %41 = vector.shape_cast %40 : vector<1x8x32xf32> to vector<8x32xf32>
    %cst_36 = arith.constant dense<0.000000e+00> : vector<8x32xf32>
    %42 = tpu.matmul %36, %14, %cst_36 {dimension_numbers = #tpu.dot_dimension_numbers<[1], [0], [0], [1], [0, 0, 1, 1], [], []>} : vector<8x32xf32>, vector<32x32xf32>, vector<8x32xf32> -> vector<8x32xf32>
    %43 = arith.addf %41, %42 : vector<8x32xf32>
    %44 = math.tanh %43 : vector<8x32xf32>
    %c3_37 = arith.constant 3 : index
    %c0_38 = arith.constant 0 : index
    %c0_39 = arith.constant 0 : index
    %45 = vector.load %arg6[%c3_37, %c0_38, %c0_39] : memref<8x8x32xf32, #tpu.memory_space<vmem>>, vector<1x8x32xf32>
    %46 = vector.shape_cast %45 : vector<1x8x32xf32> to vector<8x32xf32>
    %47 = vector.shape_cast %44 : vector<8x32xf32> to vector<1x8x32xf32>
    tpu.vector_store %arg6[%c3_37, %c0_38, %c0_39], %47 {strides = array<i32>} : memref<8x8x32xf32, #tpu.memory_space<vmem>>, vector<1x8x32xf32>,
    %c4 = arith.constant 4 : index
    %c0_40 = arith.constant 0 : index
    %c0_41 = arith.constant 0 : index
    %48 = vector.load %arg6[%c4, %c0_40, %c0_41] : memref<8x8x32xf32, #tpu.memory_space<vmem>>, vector<1x8x32xf32>
    %49 = vector.shape_cast %48 : vector<1x8x32xf32> to vector<8x32xf32>
    %cst_42 = arith.constant dense<0.000000e+00> : vector<8x32xf32>
    %50 = tpu.matmul %44, %14, %cst_42 {dimension_numbers = #tpu.dot_dimension_numbers<[1], [0], [0], [1], [0, 0, 1, 1], [], []>} : vector<8x32xf32>, vector<32x32xf32>, vector<8x32xf32> -> vector<8x32xf32>
    %51 = arith.addf %49, %50 : vector<8x32xf32>
    %52 = math.tanh %51 : vector<8x32xf32>
    %c4_43 = arith.constant 4 : index
    %c0_44 = arith.constant 0 : index
    %c0_45 = arith.constant 0 : index
    %53 = vector.load %arg6[%c4_43, %c0_44, %c0_45] : memref<8x8x32xf32, #tpu.memory_space<vmem>>, vector<1x8x32xf32>
    %54 = vector.shape_cast %53 : vector<1x8x32xf32> to vector<8x32xf32>
    %55 = vector.shape_cast %52 : vector<8x32xf32> to vector<1x8x32xf32>
    tpu.vector_store %arg6[%c4_43, %c0_44, %c0_45], %55 {strides = array<i32>} : memref<8x8x32xf32, #tpu.memory_space<vmem>>, vector<1x8x32xf32>,
    %c5 = arith.constant 5 : index
    %c0_46 = arith.constant 0 : index
    %c0_47 = arith.constant 0 : index
    %56 = vector.load %arg6[%c5, %c0_46, %c0_47] : memref<8x8x32xf32, #tpu.memory_space<vmem>>, vector<1x8x32xf32>
    %57 = vector.shape_cast %56 : vector<1x8x32xf32> to vector<8x32xf32>
    %cst_48 = arith.constant dense<0.000000e+00> : vector<8x32xf32>
    %58 = tpu.matmul %52, %14, %cst_48 {dimension_numbers = #tpu.dot_dimension_numbers<[1], [0], [0], [1], [0, 0, 1, 1], [], []>} : vector<8x32xf32>, vector<32x32xf32>, vector<8x32xf32> -> vector<8x32xf32>
    %59 = arith.addf %57, %58 : vector<8x32xf32>
    %60 = math.tanh %59 : vector<8x32xf32>
    %c5_49 = arith.constant 5 : index
    %c0_50 = arith.constant 0 : index
    %c0_51 = arith.constant 0 : index
    %61 = vector.load %arg6[%c5_49, %c0_50, %c0_51] : memref<8x8x32xf32, #tpu.memory_space<vmem>>, vector<1x8x32xf32>
    %62 = vector.shape_cast %61 : vector<1x8x32xf32> to vector<8x32xf32>
    %63 = vector.shape_cast %60 : vector<8x32xf32> to vector<1x8x32xf32>
    tpu.vector_store %arg6[%c5_49, %c0_50, %c0_51], %63 {strides = array<i32>} : memref<8x8x32xf32, #tpu.memory_space<vmem>>, vector<1x8x32xf32>,
    %c6 = arith.constant 6 : index
    %c0_52 = arith.constant 0 : index
    %c0_53 = arith.constant 0 : index
    %64 = vector.load %arg6[%c6, %c0_52, %c0_53] : memref<8x8x32xf32, #tpu.memory_space<vmem>>, vector<1x8x32xf32>
    %65 = vector.shape_cast %64 : vector<1x8x32xf32> to vector<8x32xf32>
    %cst_54 = arith.constant dense<0.000000e+00> : vector<8x32xf32>
    %66 = tpu.matmul %60, %14, %cst_54 {dimension_numbers = #tpu.dot_dimension_numbers<[1], [0], [0], [1], [0, 0, 1, 1], [], []>} : vector<8x32xf32>, vector<32x32xf32>, vector<8x32xf32> -> vector<8x32xf32>
    %67 = arith.addf %65, %66 : vector<8x32xf32>
    %68 = math.tanh %67 : vector<8x32xf32>
    %c6_55 = arith.constant 6 : index
    %c0_56 = arith.constant 0 : index
    %c0_57 = arith.constant 0 : index
    %69 = vector.load %arg6[%c6_55, %c0_56, %c0_57] : memref<8x8x32xf32, #tpu.memory_space<vmem>>, vector<1x8x32xf32>
    %70 = vector.shape_cast %69 : vector<1x8x32xf32> to vector<8x32xf32>
    %71 = vector.shape_cast %68 : vector<8x32xf32> to vector<1x8x32xf32>
    tpu.vector_store %arg6[%c6_55, %c0_56, %c0_57], %71 {strides = array<i32>} : memref<8x8x32xf32, #tpu.memory_space<vmem>>, vector<1x8x32xf32>,
    %c7 = arith.constant 7 : index
    %c0_58 = arith.constant 0 : index
    %c0_59 = arith.constant 0 : index
    %72 = vector.load %arg6[%c7, %c0_58, %c0_59] : memref<8x8x32xf32, #tpu.memory_space<vmem>>, vector<1x8x32xf32>
    %73 = vector.shape_cast %72 : vector<1x8x32xf32> to vector<8x32xf32>
    %cst_60 = arith.constant dense<0.000000e+00> : vector<8x32xf32>
    %74 = tpu.matmul %68, %14, %cst_60 {dimension_numbers = #tpu.dot_dimension_numbers<[1], [0], [0], [1], [0, 0, 1, 1], [], []>} : vector<8x32xf32>, vector<32x32xf32>, vector<8x32xf32> -> vector<8x32xf32>
    %75 = arith.addf %73, %74 : vector<8x32xf32>
    %76 = math.tanh %75 : vector<8x32xf32>
    %c7_61 = arith.constant 7 : index
    %c0_62 = arith.constant 0 : index
    %c0_63 = arith.constant 0 : index
    %77 = vector.load %arg6[%c7_61, %c0_62, %c0_63] : memref<8x8x32xf32, #tpu.memory_space<vmem>>, vector<1x8x32xf32>
    %78 = vector.shape_cast %77 : vector<1x8x32xf32> to vector<8x32xf32>
    %79 = vector.shape_cast %76 : vector<8x32xf32> to vector<1x8x32xf32>
    tpu.vector_store %arg6[%c7_61, %c0_62, %c0_63], %79 {strides = array<i32>} : memref<8x8x32xf32, #tpu.memory_space<vmem>>, vector<1x8x32xf32>,
    %c0_64 = arith.constant 0 : index
    %c0_65 = arith.constant 0 : index
    %80 = vector.load %arg5[%c0_64, %c0_65] : memref<8x32xf32, #tpu.memory_space<vmem>>, vector<8x32xf32>
    tpu.vector_store %arg5[%c0_64, %c0_65], %76 {strides = array<i32>} : memref<8x32xf32, #tpu.memory_space<vmem>>, vector<8x32xf32>,
    %c0_66 = arith.constant 0 : index
    %c0_67 = arith.constant 0 : index
    %c0_68 = arith.constant 0 : index
    %81 = vector.load %arg6[%c0_66, %c0_67, %c0_68] : memref<8x8x32xf32, #tpu.memory_space<vmem>>, vector<8x8x32xf32>
    %82 = vector.shape_cast %2 : vector<1x32xf32> to vector<1x1x32xf32>
    %83 = vector.broadcast %82 : vector<1x1x32xf32> to vector<8x8x32xf32>
    %84 = arith.mulf %81, %83 : vector<8x8x32xf32>
    %cst_69 = arith.constant dense<0.000000e+00> : vector<8x8xf32>
    %85 = vector.multi_reduction <add>, %84, %cst_69 [2] : vector<8x8x32xf32> to vector<8x8xf32>
    %86 = vector.broadcast %3 : vector<1x1xf32> to vector<8x8xf32>
    %87 = arith.addf %85, %86 : vector<8x8xf32>
    %c0_70 = arith.constant 0 : index
    %c0_71 = arith.constant 0 : index
    %88 = vector.load %arg4[%c0_70, %c0_71] : memref<8x8xf32, #tpu.memory_space<vmem>>, vector<8x8xf32>
    tpu.vector_store %arg4[%c0_70, %c0_71], %87 {strides = array<i32>} : memref<8x8xf32, #tpu.memory_space<vmem>>, vector<8x8xf32>,
    return
  }
}

</mosaic_0001>

<llo_original>
// kernel: tpu_custom_call.1
$region0: #{tpu_custom_call.1}
  #allocation0 [shape = 'u32[]', space=smem, size = 0x4, offset = 0x4, fixed_abs, tag = 'smem constant byte address 0x4 - core index']
  #allocation1 [shape = 'u32[144,128]{1,0:T(1,128)}', space=vmem, size = 0x12000, scoped, tag = 'internal scratch']
  #allocation2 [shape = 'f32[8,8,32]{2,1,0:T(8,128)}', space=vmem, size = 0x8000, scoped, tag = 'scratch operand']
  %s0 = inlined_call_operand.hbm [shape: f32[8,8], index: 0, kind: input, shape index: {}]
  %s1 = inlined_call_operand.hbm [shape: f32[8,32], index: 1, kind: input, shape index: {}]
  %s2 = inlined_call_operand.hbm [shape: f32[32,32], index: 2, kind: input, shape index: {}]
  %s3 = inlined_call_operand.hbm [shape: f32[8,32], index: 3, kind: input, shape index: {}]
  %s4 = inlined_call_operand.hbm [shape: f32[8,8], index: 4, kind: output, shape index: {0}]
  %s5 = inlined_call_operand.hbm [shape: f32[8,32], index: 5, kind: output, shape index: {1}]
  %6 = xla_tuple %s4, %s5
  %s7 = sld [smem:[#allocation0]]
  $region50: #{tpu_custom_call.1} parent=0
    _
  %s9 = ssub.s32 1, %s7
  %s10 = scalar_select 0, %s9, %s7
  $region1: #{tpu_custom_call.1} parent=0
    #allocation3 [shape = 'u8[4096]{0}', space=vmem, size = 0x1000, scoped, tag = 'input window, operand 0, single buffered']
    #allocation4 [shape = 's32[1]{0}', space=sflag, size = 0x4, scoped, tag = 'scoped memory for tpu_custom_call.1']
    #allocation5 [shape = 's32[1]{0}', space=sflag, size = 0x4, scoped, tag = 'scoped memory for tpu_custom_call.1']
    #allocation6 [shape = 'u8[4096]{0}', space=vmem, size = 0x1000, scoped, tag = 'input window, operand 1, single buffered']
    #allocation7 [shape = 's32[1]{0}', space=sflag, size = 0x4, scoped, tag = 'scoped memory for tpu_custom_call.1']
    #allocation8 [shape = 'u8[16384]{0}', space=vmem, size = 0x4000, scoped, tag = 'input window, operand 2, single buffered']
    #allocation9 [shape = 'u8[4096]{0}', space=vmem, size = 0x1000, scoped, tag = 'input window, operand 3, single buffered']
    #allocation10 [shape = 's32[1]{0}', space=sflag, size = 0x4, scoped, tag = 'scoped memory for tpu_custom_call.1']
    #allocation11 [shape = 'u8[4096]{0}', space=vmem, size = 0x1000, scoped, tag = 'output window, operand 0, single buffered']
    #allocation12 [shape = 'u8[4096]{0}', space=vmem, size = 0x1000, scoped, tag = 'output window, operand 1, single buffered']
    #allocation13 [shape = 's32[1]{0}', space=sflag, size = 0x4, scoped, tag = 'scoped memory for tpu_custom_call.1']
    %11 = vsyncpa [#allocation4], 0
    %12 = vsyncpa [#allocation7], 0
    %13 = vsyncpa [#allocation10], 0
    %14 = vsyncpa [#allocation5], 0
    %15 = vsyncpa [#allocation13], 0
    // Predicated region
    $region2: #{tpu_custom_call.1} parent=1 // pred_check
      _
    $region3: #{tpu_custom_call.1} parent=1 // pred_check_branch
      %17 = sbr.rel (0) target = $region5
    $region4: #{tpu_custom_call.1} parent=1 // pred_region
      %s19 = ssub.s32 128, 128
      %20 = vsyncadd [#allocation4], %s19
      %s22 = sshll.u32 [#allocation3], 4
      %s23 = int_to_ptr.vmem [resolvable:$true] %s22
      %25 = dma.hbm_to_vmem [thread:$0]  %s0, 128, %s23, [#allocation4]
    $region5: #{tpu_custom_call.1} parent=1 // pred_fallthru
      _
    // Predicated region
    $region6: #{tpu_custom_call.1} parent=1 // pred_check
      _
    $region7: #{tpu_custom_call.1} parent=1 // pred_check_branch
      %27 = sbr.rel (0) target = $region9
    $region8: #{tpu_custom_call.1} parent=1 // pred_region
      %s29 = ssub.s32 128, 128
      %30 = vsyncadd [#allocation7], %s29
      %s32 = sshll.u32 [#allocation6], 4
      %s33 = int_to_ptr.vmem [resolvable:$true] %s32
      %35 = dma.hbm_to_vmem [thread:$0]  %s1, 128, %s33, [#allocation7]
    $region9: #{tpu_custom_call.1} parent=1 // pred_fallthru
      _
    // Predicated region
    $region10: #{tpu_custom_call.1} parent=1 // pred_check
      _
    $region11: #{tpu_custom_call.1} parent=1 // pred_check_branch
      %37 = sbr.rel (0) target = $region13
    $region12: #{tpu_custom_call.1} parent=1 // pred_region
      %s39 = ssub.s32 512, 512
      %40 = vsyncadd [#allocation7], %s39
      %s41 = sshll.u32 [#allocation8], 4
      %s42 = int_to_ptr.vmem [resolvable:$true] %s41
      %47 = dma.hbm_to_vmem [thread:$0]  %s2, 512, %s42, [#allocation7], 128, 128, 8
    $region13: #{tpu_custom_call.1} parent=1 // pred_fallthru
      _
    // Predicated region
    $region14: #{tpu_custom_call.1} parent=1 // pred_check
      _
    $region15: #{tpu_custom_call.1} parent=1 // pred_check_branch
      %49 = sbr.rel (0) target = $region17
    $region16: #{tpu_custom_call.1} parent=1 // pred_region
      %s51 = ssub.s32 128, 128
      %52 = vsyncadd [#allocation10], %s51
      %s54 = sshll.u32 [#allocation9], 4
      %s55 = int_to_ptr.vmem [resolvable:$true] %s54
      %57 = dma.hbm_to_vmem [thread:$0]  %s3, 128, %s55, [#allocation10]
    $region17: #{tpu_custom_call.1} parent=1 // pred_fallthru
      _
    // Predicated region
    $region18: #{tpu_custom_call.1} parent=1 // pred_check
      _
    $region19: #{tpu_custom_call.1} parent=1 // pred_check_branch
      %59 = sbr.rel (0) target = $region21
    $region20: #{tpu_custom_call.1} parent=1 // pred_region
      %60 = dma.done [#allocation4], 128
    $region21: #{tpu_custom_call.1} parent=1 // pred_fallthru
      _
    // Predicated region
    $region22: #{tpu_custom_call.1} parent=1 // pred_check
      _
    $region23: #{tpu_custom_call.1} parent=1 // pred_check_branch
      %62 = sbr.rel (0) target = $region25
    $region24: #{tpu_custom_call.1} parent=1 // pred_region
      %63 = dma.done [#allocation7], 128
    $region25: #{tpu_custom_call.1} parent=1 // pred_fallthru
      _
    // Predicated region
    $region26: #{tpu_custom_call.1} parent=1 // pred_check
      _
    $region27: #{tpu_custom_call.1} parent=1 // pred_check_branch
      %65 = sbr.rel (0) target = $region29
    $region28: #{tpu_custom_call.1} parent=1 // pred_region
      %66 = dma.done [#allocation7], 512
    $region29: #{tpu_custom_call.1} parent=1 // pred_fallthru
      _
    // Predicated region
    $region30: #{tpu_custom_call.1} parent=1 // pred_check
      _
    $region31: #{tpu_custom_call.1} parent=1 // pred_check_branch
      %68 = sbr.rel (0) target = $region33
    $region32: #{tpu_custom_call.1} parent=1 // pred_region
      %69 = dma.done [#allocation10], 128
    $region33: #{tpu_custom_call.1} parent=1 // pred_fallthru
      _
    %v70 = vld [vmem:[#allocation9] sm:$0x1]
    %v71 = vld [vmem:[#allocation9 + $0x1] sm:$0x1]
    %v72 = vld [vmem:[#allocation9 + $0x2] sm:$0x1]
    %v73 = vld [vmem:[#allocation9 + $0x3] sm:$0x1]
    %v74 = vld [vmem:[#allocation3] sm:$0xff]
    %v75 = vlaneseq
    %v76 = vshrl.u32 %v75, 7
    %v77 = vsub.s32 0, %v76
    %v78 = vrot.slane %v74, %v77
    %80 = vbcast.lane.b32.xlu0 %v78, 256
    %v81 = vpop.permute.xlu0 %80
    %v82 = vlaneseq
    %v83 = vshrl.u32 %v82, 7
    %v84 = vsub.s32 1, %v83
    %v85 = vrot.slane %v74, %v84
    %87 = vbcast.lane.b32.xlu0 %v85, 256
    %v88 = vpop.permute.xlu0 %87
    %v89 = vlaneseq
    %v90 = vshrl.u32 %v89, 7
    %v91 = vsub.s32 2, %v90
    %v92 = vrot.slane %v74, %v91
    %94 = vbcast.lane.b32.xlu0 %v92, 256
    %v95 = vpop.permute.xlu0 %94
    %v96 = vlaneseq
    %v97 = vshrl.u32 %v96, 7
    %v98 = vsub.s32 3, %v97
    %v99 = vrot.slane %v74, %v98
    %101 = vbcast.lane.b32.xlu0 %v99, 256
    %v102 = vpop.permute.xlu0 %101
    %v103 = vlaneseq
    %v104 = vshrl.u32 %v103, 7
    %v105 = vsub.s32 4, %v104
    %v106 = vrot.slane %v74, %v105
    %108 = vbcast.lane.b32.xlu0 %v106, 256
    %v109 = vpop.permute.xlu0 %108
    %v110 = vlaneseq
    %v111 = vshrl.u32 %v110, 7
    %v112 = vsub.s32 5, %v111
    %v113 = vrot.slane %v74, %v112
    %115 = vbcast.lane.b32.xlu0 %v113, 256
    %v116 = vpop.permute.xlu0 %115
    %v117 = vlaneseq
    %v118 = vshrl.u32 %v117, 7
    %v119 = vsub.s32 6, %v118
    %v120 = vrot.slane %v74, %v119
    %122 = vbcast.lane.b32.xlu0 %v120, 256
    %v123 = vpop.permute.xlu0 %122
    %v124 = vlaneseq
    %v125 = vshrl.u32 %v124, 7
    %v126 = vsub.s32 7, %v125
    %v127 = vrot.slane %v74, %v126
    %129 = vbcast.lane.b32.xlu0 %v127, 256
    %v130 = vpop.permute.xlu0 %129
    %v131 = vlaneseq
    %v132 = vshrl.u32 %v131, 7
    %v133 = vsub.s32 0, %v132
    %v134 = vrot.slane %v70, %v133
    %v135 = vmul.f32 %v81, %v134
    %v136 = vmul.f32 %v88, %v134
    %v137 = vmul.f32 %v95, %v134
    %v138 = vmul.f32 %v102, %v134
    %v139 = vmul.f32 %v109, %v134
    %v140 = vmul.f32 %v116, %v134
    %v141 = vmul.f32 %v123, %v134
    %v142 = vmul.f32 %v130, %v134
    %v143 = vlaneseq
    %v144 = vshrl.u32 %v143, 7
    %v145 = vsub.s32 0, %v144
    %v146 = vrot.slane %v71, %v145
    %v147 = vadd.f32 %v135, %v146
    %v148 = vadd.f32 %v136, %v146
    %v149 = vadd.f32 %v137, %v146
    %v150 = vadd.f32 %v138, %v146
    %v151 = vadd.f32 %v139, %v146
    %v152 = vadd.f32 %v140, %v146
    %v153 = vadd.f32 %v141, %v146
    %v154 = vadd.f32 %v142, %v146
    %vm155 = vcmask 261120
    %156 = vst.msk [vmem:[#allocation2] sm:$0xff] %vm155, %v147
    %157 = vst.msk [vmem:[#allocation2 + $0x8] sm:$0xff] %vm155, %v148
    %158 = vst.msk [vmem:[#allocation2 + $0x10] sm:$0xff] %vm155, %v149
    %159 = vst.msk [vmem:[#allocation2 + $0x18] sm:$0xff] %vm155, %v150
    %160 = vst.msk [vmem:[#allocation2 + $0x20] sm:$0xff] %vm155, %v151
    %161 = vst.msk [vmem:[#allocation2 + $0x28] sm:$0xff] %vm155, %v152
    %162 = vst.msk [vmem:[#allocation2 + $0x30] sm:$0xff] %vm155, %v153
    %163 = vst.msk [vmem:[#allocation2 + $0x38] sm:$0xff] %vm155, %v154
    %v164 = vld [vmem:[#allocation8] sm:$0xff]
    %v165 = vld [vmem:[#allocation8 + $0x8] sm:$0xff]
    %v166 = vld [vmem:[#allocation8 + $0x10] sm:$0xff]
    %v167 = vld [vmem:[#allocation8 + $0x18] sm:$0xff]
    %v168 = vld [vmem:[#allocation6] sm:$0xff]
    %v169 = vld [vmem:[#allocation2] sm:$0xff]
    %v171 = vsel %vm155, %v168, 0
    %173 = vmatprep.subr.mxu0 0.0
    %174 = vmatpush1.msra.mxu0 0.0
    %175 = vmatprep.subr.mxu0 0.0
    %176 = vmatpush1.msra.mxu0 0.0
    %177 = vmatprep.subr.mxu0 0.0
    %178 = vmatpush1.msra.mxu0 0.0
    %179 = vmatprep.subr.mxu0 0.0
    %180 = vmatpush1.msra.mxu0 0.0
    %181 = vmatprep.subr.mxu0 0.0
    %182 = vmatpush1.msra.mxu0 0.0
    %183 = vmatprep.subr.mxu0 0.0
    %184 = vmatpush1.msra.mxu0 0.0
    %185 = vmatprep.subr.mxu0 0.0
    %186 = vmatpush1.msra.mxu0 0.0
    %187 = vmatprep.subr.mxu0 0.0
    %188 = vmatpush1.msra.mxu0 0.0
    %189 = vmatprep.subr.mxu0 0.0
    %190 = vmatpush1.msra.mxu0 0.0
    %191 = vmatprep.subr.mxu0 0.0
    %192 = vmatpush1.msra.mxu0 0.0
    %193 = vmatprep.subr.mxu0 0.0
    %194 = vmatpush1.msra.mxu0 0.0
    %195 = vmatprep.subr.mxu0 0.0
    %196 = vmatpush1.msra.mxu0 0.0
    %197 = vmatprep.subr.mxu0 0.0
    %198 = vmatpush1.msra.mxu0 %v167
    %199 = vmatprep.subr.mxu0 0.0
    %200 = vmatpush1.msra.mxu0 %v166
    %201 = vmatprep.subr.mxu0 0.0
    %202 = vmatpush1.msra.mxu0 %v165
    %203 = vmatprep.subr.mxu0 0.0
    %204 = vmatpush1.msra.mxu0 %v164
    %205 = vmatprep.subr.mxu0 0.0
    %206 = vmatpush2.msra.mxu0 0.0
    %207 = vmatprep.subr.mxu0 0.0
    %208 = vmatpush2.msra.mxu0 0.0
    %209 = vmatprep.subr.mxu0 0.0
    %210 = vmatpush2.msra.mxu0 0.0
    %211 = vmatprep.subr.mxu0 0.0
    %212 = vmatpush2.msra.mxu0 0.0
    %213 = vmatprep.subr.mxu0 0.0
    %214 = vmatpush2.msra.mxu0 0.0
    %215 = vmatprep.subr.mxu0 0.0
    %216 = vmatpush2.msra.mxu0 0.0
    %217 = vmatprep.subr.mxu0 0.0
    %218 = vmatpush2.msra.mxu0 0.0
    %219 = vmatprep.subr.mxu0 0.0
    %220 = vmatpush2.msra.mxu0 0.0
    %221 = vmatprep.subr.mxu0 0.0
    %222 = vmatpush2.msra.mxu0 0.0
    %223 = vmatprep.subr.mxu0 0.0
    %224 = vmatpush2.msra.mxu0 0.0
    %225 = vmatprep.subr.mxu0 0.0
    %226 = vmatpush2.msra.mxu0 0.0
    %227 = vmatprep.subr.mxu0 0.0
    %228 = vmatpush2.msra.mxu0 0.0
    %229 = vmatprep.subr.mxu0 0.0
    %230 = vmatpush2.msra.mxu0 0.0
    %231 = vmatprep.subr.mxu0 0.0
    %232 = vmatpush2.msra.mxu0 0.0
    %233 = vmatprep.subr.mxu0 0.0
    %234 = vmatpush2.msra.mxu0 0.0
    %235 = vmatprep.subr.mxu0 0.0
    %236 = vmatpush2.msra.mxu0 0.0
    %237 = vmatprep.mubr.f32.mxu0 0.0
    %238 = vmatmul.mubr.f32.gmra.mxu0 %v171
    %v239 = vpop.f32.mrf.mxu0
    %v240 = vadd.f32 0.0, %v239
    %v241 = vpop.f32.mrf.mxu0
    %242 = vdwg.mxu0
    %v243 = vadd.f32 %v169, %v240
    %v244 = vtanh.pop %v243
    %245 = vst.msk [vmem:[#allocation2] sm:$0xff] %vm155, %v244
    %s246 = scalar_lea.vmem [#allocation2], 8
    %v247 = vld [vmem:[%s246] sm:$0xff]
    %v249 = vsel %vm155, %v244, 0
    %251 = vmatprep.subr.mxu0 0.0
    %252 = vmatpush1.msra.mxu0 0.0
    %253 = vmatprep.subr.mxu0 0.0
    %254 = vmatpush1.msra.mxu0 0.0
    %255 = vmatprep.subr.mxu0 0.0
    %256 = vmatpush1.msra.mxu0 0.0
    %257 = vmatprep.subr.mxu0 0.0
    %258 = vmatpush1.msra.mxu0 0.0
    %259 = vmatprep.subr.mxu0 0.0
    %260 = vmatpush1.msra.mxu0 0.0
    %261 = vmatprep.subr.mxu0 0.0
    %262 = vmatpush1.msra.mxu0 0.0
    %263 = vmatprep.subr.mxu0 0.0
    %264 = vmatpush1.msra.mxu0 0.0
    %265 = vmatprep.subr.mxu0 0.0
    %266 = vmatpush1.msra.mxu0 0.0
    %267 = vmatprep.subr.mxu0 0.0
    %268 = vmatpush1.msra.mxu0 0.0
    %269 = vmatprep.subr.mxu0 0.0
    %270 = vmatpush1.msra.mxu0 0.0
    %271 = vmatprep.subr.mxu0 0.0
    %272 = vmatpush1.msra.mxu0 0.0
    %273 = vmatprep.subr.mxu0 0.0
    %274 = vmatpush1.msra.mxu0 0.0
    %275 = vmatprep.subr.mxu0 0.0
    %276 = vmatpush1.msra.mxu0 %v167
    %277 = vmatprep.subr.mxu0 0.0
    %278 = vmatpush1.msra.mxu0 %v166
    %279 = vmatprep.subr.mxu0 0.0
    %280 = vmatpush1.msra.mxu0 %v165
    %281 = vmatprep.subr.mxu0 0.0
    %282 = vmatpush1.msra.mxu0 %v164
    %283 = vmatprep.subr.mxu0 0.0
    %284 = vmatpush2.msra.mxu0 0.0
    %285 = vmatprep.subr.mxu0 0.0
    %286 = vmatpush2.msra.mxu0 0.0
    %287 = vmatprep.subr.mxu0 0.0
    %288 = vmatpush2.msra.mxu0 0.0
    %289 = vmatprep.subr.mxu0 0.0
    %290 = vmatpush2.msra.mxu0 0.0
    %291 = vmatprep.subr.mxu0 0.0
    %292 = vmatpush2.msra.mxu0 0.0
    %293 = vmatprep.subr.mxu0 0.0
    %294 = vmatpush2.msra.mxu0 0.0
    %295 = vmatprep.subr.mxu0 0.0
    %296 = vmatpush2.msra.mxu0 0.0
    %297 = vmatprep.subr.mxu0 0.0
    %298 = vmatpush2.msra.mxu0 0.0
    %299 = vmatprep.subr.mxu0 0.0
    %300 = vmatpush2.msra.mxu0 0.0
    %301 = vmatprep.subr.mxu0 0.0
    %302 = vmatpush2.msra.mxu0 0.0
    %303 = vmatprep.subr.mxu0 0.0
    %304 = vmatpush2.msra.mxu0 0.0
    %305 = vmatprep.subr.mxu0 0.0
    %306 = vmatpush2.msra.mxu0 0.0
    %307 = vmatprep.subr.mxu0 0.0
    %308 = vmatpush2.msra.mxu0 0.0
    %309 = vmatprep.subr.mxu0 0.0
    %310 = vmatpush2.msra.mxu0 0.0
    %311 = vmatprep.subr.mxu0 0.0
    %312 = vmatpush2.msra.mxu0 0.0
    %313 = vmatprep.subr.mxu0 0.0
    %314 = vmatpush2.msra.mxu0 0.0
    %315 = vmatprep.mubr.f32.mxu0 0.0
    %316 = vmatmul.mubr.f32.gmra.mxu0 %v249
    %v317 = vpop.f32.mrf.mxu0
    %v318 = vadd.f32 0.0, %v317
    %v319 = vpop.f32.mrf.mxu0
    %320 = vdwg.mxu0
    %v321 = vadd.f32 %v247, %v318
    %v322 = vtanh.pop %v321
    %323 = vst.msk [vmem:[%s246] sm:$0xff] %vm155, %v322
    %s324 = scalar_lea.vmem [#allocation2], 16
    %v325 = vld [vmem:[%s324] sm:$0xff]
    %v327 = vsel %vm155, %v322, 0
    %329 = vmatprep.subr.mxu0 0.0
    %330 = vmatpush1.msra.mxu0 0.0
    %331 = vmatprep.subr.mxu0 0.0
    %332 = vmatpush1.msra.mxu0 0.0
    %333 = vmatprep.subr.mxu0 0.0
    %334 = vmatpush1.msra.mxu0 0.0
    %335 = vmatprep.subr.mxu0 0.0
    %336 = vmatpush1.msra.mxu0 0.0
    %337 = vmatprep.subr.mxu0 0.0
    %338 = vmatpush1.msra.mxu0 0.0
    %339 = vmatprep.subr.mxu0 0.0
    %340 = vmatpush1.msra.mxu0 0.0
    %341 = vmatprep.subr.mxu0 0.0
    %342 = vmatpush1.msra.mxu0 0.0
    %343 = vmatprep.subr.mxu0 0.0
    %344 = vmatpush1.msra.mxu0 0.0
    %345 = vmatprep.subr.mxu0 0.0
    %346 = vmatpush1.msra.mxu0 0.0
    %347 = vmatprep.subr.mxu0 0.0
    %348 = vmatpush1.msra.mxu0 0.0
    %349 = vmatprep.subr.mxu0 0.0
    %350 = vmatpush1.msra.mxu0 0.0
    %351 = vmatprep.subr.mxu0 0.0
    %352 = vmatpush1.msra.mxu0 0.0
    %353 = vmatprep.subr.mxu0 0.0
    %354 = vmatpush1.msra.mxu0 %v167
    %355 = vmatprep.subr.mxu0 0.0
    %356 = vmatpush1.msra.mxu0 %v166
    %357 = vmatprep.subr.mxu0 0.0
    %358 = vmatpush1.msra.mxu0 %v165
    %359 = vmatprep.subr.mxu0 0.0
    %360 = vmatpush1.msra.mxu0 %v164
    %361 = vmatprep.subr.mxu0 0.0
    %362 = vmatpush2.msra.mxu0 0.0
    %363 = vmatprep.subr.mxu0 0.0
    %364 = vmatpush2.msra.mxu0 0.0
    %365 = vmatprep.subr.mxu0 0.0
    %366 = vmatpush2.msra.mxu0 0.0
    %367 = vmatprep.subr.mxu0 0.0
    %368 = vmatpush2.msra.mxu0 0.0
    %369 = vmatprep.subr.mxu0 0.0
    %370 = vmatpush2.msra.mxu0 0.0
    %371 = vmatprep.subr.mxu0 0.0
    %372 = vmatpush2.msra.mxu0 0.0
    %373 = vmatprep.subr.mxu0 0.0
    %374 = vmatpush2.msra.mxu0 0.0
    %375 = vmatprep.subr.mxu0 0.0
    %376 = vmatpush2.msra.mxu0 0.0
    %377 = vmatprep.subr.mxu0 0.0
    %378 = vmatpush2.msra.mxu0 0.0
    %379 = vmatprep.subr.mxu0 0.0
    %380 = vmatpush2.msra.mxu0 0.0
    %381 = vmatprep.subr.mxu0 0.0
    %382 = vmatpush2.msra.mxu0 0.0
    %383 = vmatprep.subr.mxu0 0.0
    %384 = vmatpush2.msra.mxu0 0.0
    %385 = vmatprep.subr.mxu0 0.0
    %386 = vmatpush2.msra.mxu0 0.0
    %387 = vmatprep.subr.mxu0 0.0
    %388 = vmatpush2.msra.mxu0 0.0
    %389 = vmatprep.subr.mxu0 0.0
    %390 = vmatpush2.msra.mxu0 0.0
    %391 = vmatprep.subr.mxu0 0.0
    %392 = vmatpush2.msra.mxu0 0.0
    %393 = vmatprep.mubr.f32.mxu0 0.0
    %394 = vmatmul.mubr.f32.gmra.mxu0 %v327
    %v395 = vpop.f32.mrf.mxu0
    %v396 = vadd.f32 0.0, %v395
    %v397 = vpop.f32.mrf.mxu0
    %398 = vdwg.mxu0
    %v399 = vadd.f32 %v325, %v396
    %v400 = vtanh.pop %v399
    %401 = vst.msk [vmem:[%s324] sm:$0xff] %vm155, %v400
    %s402 = scalar_lea.vmem [#allocation2], 24
    %v403 = vld [vmem:[%s402] sm:$0xff]
    %v405 = vsel %vm155, %v400, 0
    %407 = vmatprep.subr.mxu0 0.0
    %408 = vmatpush1.msra.mxu0 0.0
    %409 = vmatprep.subr.mxu0 0.0
    %410 = vmatpush1.msra.mxu0 0.0
    %411 = vmatprep.subr.mxu0 0.0
    %412 = vmatpush1.msra.mxu0 0.0
    %413 = vmatprep.subr.mxu0 0.0
    %414 = vmatpush1.msra.mxu0 0.0
    %415 = vmatprep.subr.mxu0 0.0
    %416 = vmatpush1.msra.mxu0 0.0
    %417 = vmatprep.subr.mxu0 0.0
    %418 = vmatpush1.msra.mxu0 0.0
    %419 = vmatprep.subr.mxu0 0.0
    %420 = vmatpush1.msra.mxu0 0.0
    %421 = vmatprep.subr.mxu0 0.0
    %422 = vmatpush1.msra.mxu0 0.0
    %423 = vmatprep.subr.mxu0 0.0
    %424 = vmatpush1.msra.mxu0 0.0
    %425 = vmatprep.subr.mxu0 0.0
    %426 = vmatpush1.msra.mxu0 0.0
    %427 = vmatprep.subr.mxu0 0.0
    %428 = vmatpush1.msra.mxu0 0.0
    %429 = vmatprep.subr.mxu0 0.0
    %430 = vmatpush1.msra.mxu0 0.0
    %431 = vmatprep.subr.mxu0 0.0
    %432 = vmatpush1.msra.mxu0 %v167
    %433 = vmatprep.subr.mxu0 0.0
    %434 = vmatpush1.msra.mxu0 %v166
    %435 = vmatprep.subr.mxu0 0.0
    %436 = vmatpush1.msra.mxu0 %v165
    %437 = vmatprep.subr.mxu0 0.0
    %438 = vmatpush1.msra.mxu0 %v164
    %439 = vmatprep.subr.mxu0 0.0
    %440 = vmatpush2.msra.mxu0 0.0
    %441 = vmatprep.subr.mxu0 0.0
    %442 = vmatpush2.msra.mxu0 0.0
    %443 = vmatprep.subr.mxu0 0.0
    %444 = vmatpush2.msra.mxu0 0.0
    %445 = vmatprep.subr.mxu0 0.0
    %446 = vmatpush2.msra.mxu0 0.0
    %447 = vmatprep.subr.mxu0 0.0
    %448 = vmatpush2.msra.mxu0 0.0
    %449 = vmatprep.subr.mxu0 0.0
    %450 = vmatpush2.msra.mxu0 0.0
    %451 = vmatprep.subr.mxu0 0.0
    %452 = vmatpush2.msra.mxu0 0.0
    %453 = vmatprep.subr.mxu0 0.0
    %454 = vmatpush2.msra.mxu0 0.0
    %455 = vmatprep.subr.mxu0 0.0
    %456 = vmatpush2.msra.mxu0 0.0
    %457 = vmatprep.subr.mxu0 0.0
    %458 = vmatpush2.msra.mxu0 0.0
    %459 = vmatprep.subr.mxu0 0.0
    %460 = vmatpush2.msra.mxu0 0.0
    %461 = vmatprep.subr.mxu0 0.0
    %462 = vmatpush2.msra.mxu0 0.0
    %463 = vmatprep.subr.mxu0 0.0
    %464 = vmatpush2.msra.mxu0 0.0
    %465 = vmatprep.subr.mxu0 0.0
    %466 = vmatpush2.msra.mxu0 0.0
    %467 = vmatprep.subr.mxu0 0.0
    %468 = vmatpush2.msra.mxu0 0.0
    %469 = vmatprep.subr.mxu0 0.0
    %470 = vmatpush2.msra.mxu0 0.0
    %471 = vmatprep.mubr.f32.mxu0 0.0
    %472 = vmatmul.mubr.f32.gmra.mxu0 %v405
    %v473 = vpop.f32.mrf.mxu0
    %v474 = vadd.f32 0.0, %v473
    %v475 = vpop.f32.mrf.mxu0
    %476 = vdwg.mxu0
    %v477 = vadd.f32 %v403, %v474
    %v478 = vtanh.pop %v477
    %479 = vst.msk [vmem:[%s402] sm:$0xff] %vm155, %v478
    %s480 = scalar_lea.vmem [#allocation2], 32
    %v481 = vld [vmem:[%s480] sm:$0xff]
    %v483 = vsel %vm155, %v478, 0
    %485 = vmatprep.subr.mxu0 0.0
    %486 = vmatpush1.msra.mxu0 0.0
    %487 = vmatprep.subr.mxu0 0.0
    %488 = vmatpush1.msra.mxu0 0.0
    %489 = vmatprep.subr.mxu0 0.0
    %490 = vmatpush1.msra.mxu0 0.0
    %491 = vmatprep.subr.mxu0 0.0
    %492 = vmatpush1.msra.mxu0 0.0
    %493 = vmatprep.subr.mxu0 0.0
    %494 = vmatpush1.msra.mxu0 0.0
    %495 = vmatprep.subr.mxu0 0.0
    %496 = vmatpush1.msra.mxu0 0.0
    %497 = vmatprep.subr.mxu0 0.0
    %498 = vmatpush1.msra.mxu0 0.0
    %499 = vmatprep.subr.mxu0 0.0
    %500 = vmatpush1.msra.mxu0 0.0
    %501 = vmatprep.subr.mxu0 0.0
    %502 = vmatpush1.msra.mxu0 0.0
    %503 = vmatprep.subr.mxu0 0.0
    %504 = vmatpush1.msra.mxu0 0.0
    %505 = vmatprep.subr.mxu0 0.0
    %506 = vmatpush1.msra.mxu0 0.0
    %507 = vmatprep.subr.mxu0 0.0
    %508 = vmatpush1.msra.mxu0 0.0
    %509 = vmatprep.subr.mxu0 0.0
    %510 = vmatpush1.msra.mxu0 %v167
    %511 = vmatprep.subr.mxu0 0.0
    %512 = vmatpush1.msra.mxu0 %v166
    %513 = vmatprep.subr.mxu0 0.0
    %514 = vmatpush1.msra.mxu0 %v165
    %515 = vmatprep.subr.mxu0 0.0
    %516 = vmatpush1.msra.mxu0 %v164
    %517 = vmatprep.subr.mxu0 0.0
    %518 = vmatpush2.msra.mxu0 0.0
    %519 = vmatprep.subr.mxu0 0.0
    %520 = vmatpush2.msra.mxu0 0.0
    %521 = vmatprep.subr.mxu0 0.0
    %522 = vmatpush2.msra.mxu0 0.0
    %523 = vmatprep.subr.mxu0 0.0
    %524 = vmatpush2.msra.mxu0 0.0
    %525 = vmatprep.subr.mxu0 0.0
    %526 = vmatpush2.msra.mxu0 0.0
    %527 = vmatprep.subr.mxu0 0.0
    %528 = vmatpush2.msra.mxu0 0.0
    %529 = vmatprep.subr.mxu0 0.0
    %530 = vmatpush2.msra.mxu0 0.0
    %531 = vmatprep.subr.mxu0 0.0
    %532 = vmatpush2.msra.mxu0 0.0
    %533 = vmatprep.subr.mxu0 0.0
    %534 = vmatpush2.msra.mxu0 0.0
    %535 = vmatprep.subr.mxu0 0.0
    %536 = vmatpush2.msra.mxu0 0.0
    %537 = vmatprep.subr.mxu0 0.0
    %538 = vmatpush2.msra.mxu0 0.0
    %539 = vmatprep.subr.mxu0 0.0
    %540 = vmatpush2.msra.mxu0 0.0
    %541 = vmatprep.subr.mxu0 0.0
    %542 = vmatpush2.msra.mxu0 0.0
    %543 = vmatprep.subr.mxu0 0.0
    %544 = vmatpush2.msra.mxu0 0.0
    %545 = vmatprep.subr.mxu0 0.0
    %546 = vmatpush2.msra.mxu0 0.0
    %547 = vmatprep.subr.mxu0 0.0
    %548 = vmatpush2.msra.mxu0 0.0
    %549 = vmatprep.mubr.f32.mxu0 0.0
    %550 = vmatmul.mubr.f32.gmra.mxu0 %v483
    %v551 = vpop.f32.mrf.mxu0
    %v552 = vadd.f32 0.0, %v551
    %v553 = vpop.f32.mrf.mxu0
    %554 = vdwg.mxu0
    %v555 = vadd.f32 %v481, %v552
    %v556 = vtanh.pop %v555
    %557 = vst.msk [vmem:[%s480] sm:$0xff] %vm155, %v556
    %s558 = scalar_lea.vmem [#allocation2], 40
    %v559 = vld [vmem:[%s558] sm:$0xff]
    %v561 = vsel %vm155, %v556, 0
    %563 = vmatprep.subr.mxu0 0.0
    %564 = vmatpush1.msra.mxu0 0.0
    %565 = vmatprep.subr.mxu0 0.0
    %566 = vmatpush1.msra.mxu0 0.0
    %567 = vmatprep.subr.mxu0 0.0
    %568 = vmatpush1.msra.mxu0 0.0
    %569 = vmatprep.subr.mxu0 0.0
    %570 = vmatpush1.msra.mxu0 0.0
    %571 = vmatprep.subr.mxu0 0.0
    %572 = vmatpush1.msra.mxu0 0.0
    %573 = vmatprep.subr.mxu0 0.0
    %574 = vmatpush1.msra.mxu0 0.0
    %575 = vmatprep.subr.mxu0 0.0
    %576 = vmatpush1.msra.mxu0 0.0
    %577 = vmatprep.subr.mxu0 0.0
    %578 = vmatpush1.msra.mxu0 0.0
    %579 = vmatprep.subr.mxu0 0.0
    %580 = vmatpush1.msra.mxu0 0.0
    %581 = vmatprep.subr.mxu0 0.0
    %582 = vmatpush1.msra.mxu0 0.0
    %583 = vmatprep.subr.mxu0 0.0
    %584 = vmatpush1.msra.mxu0 0.0
    %585 = vmatprep.subr.mxu0 0.0
    %586 = vmatpush1.msra.mxu0 0.0
    %587 = vmatprep.subr.mxu0 0.0
    %588 = vmatpush1.msra.mxu0 %v167
    %589 = vmatprep.subr.mxu0 0.0
    %590 = vmatpush1.msra.mxu0 %v166
    %591 = vmatprep.subr.mxu0 0.0
    %592 = vmatpush1.msra.mxu0 %v165
    %593 = vmatprep.subr.mxu0 0.0
    %594 = vmatpush1.msra.mxu0 %v164
    %595 = vmatprep.subr.mxu0 0.0
    %596 = vmatpush2.msra.mxu0 0.0
    %597 = vmatprep.subr.mxu0 0.0
    %598 = vmatpush2.msra.mxu0 0.0
    %599 = vmatprep.subr.mxu0 0.0
    %600 = vmatpush2.msra.mxu0 0.0
    %601 = vmatprep.subr.mxu0 0.0
    %602 = vmatpush2.msra.mxu0 0.0
    %603 = vmatprep.subr.mxu0 0.0
    %604 = vmatpush2.msra.mxu0 0.0
    %605 = vmatprep.subr.mxu0 0.0
    %606 = vmatpush2.msra.mxu0 0.0
    %607 = vmatprep.subr.mxu0 0.0
    %608 = vmatpush2.msra.mxu0 0.0
    %609 = vmatprep.subr.mxu0 0.0
    %610 = vmatpush2.msra.mxu0 0.0
    %611 = vmatprep.subr.mxu0 0.0
    %612 = vmatpush2.msra.mxu0 0.0
    %613 = vmatprep.subr.mxu0 0.0
    %614 = vmatpush2.msra.mxu0 0.0
    %615 = vmatprep.subr.mxu0 0.0
    %616 = vmatpush2.msra.mxu0 0.0
    %617 = vmatprep.subr.mxu0 0.0
    %618 = vmatpush2.msra.mxu0 0.0
    %619 = vmatprep.subr.mxu0 0.0
    %620 = vmatpush2.msra.mxu0 0.0
    %621 = vmatprep.subr.mxu0 0.0
    %622 = vmatpush2.msra.mxu0 0.0
    %623 = vmatprep.subr.mxu0 0.0
    %624 = vmatpush2.msra.mxu0 0.0
    %625 = vmatprep.subr.mxu0 0.0
    %626 = vmatpush2.msra.mxu0 0.0
    %627 = vmatprep.mubr.f32.mxu0 0.0
    %628 = vmatmul.mubr.f32.gmra.mxu0 %v561
    %v629 = vpop.f32.mrf.mxu0
    %v630 = vadd.f32 0.0, %v629
    %v631 = vpop.f32.mrf.mxu0
    %632 = vdwg.mxu0
    %v633 = vadd.f32 %v559, %v630
    %v634 = vtanh.pop %v633
    %635 = vst.msk [vmem:[%s558] sm:$0xff] %vm155, %v634
    %s636 = scalar_lea.vmem [#allocation2], 48
    %v637 = vld [vmem:[%s636] sm:$0xff]
    %v639 = vsel %vm155, %v634, 0
    %641 = vmatprep.subr.mxu0 0.0
    %642 = vmatpush1.msra.mxu0 0.0
    %643 = vmatprep.subr.mxu0 0.0
    %644 = vmatpush1.msra.mxu0 0.0
    %645 = vmatprep.subr.mxu0 0.0
    %646 = vmatpush1.msra.mxu0 0.0
    %647 = vmatprep.subr.mxu0 0.0
    %648 = vmatpush1.msra.mxu0 0.0
    %649 = vmatprep.subr.mxu0 0.0
    %650 = vmatpush1.msra.mxu0 0.0
    %651 = vmatprep.subr.mxu0 0.0
    %652 = vmatpush1.msra.mxu0 0.0
    %653 = vmatprep.subr.mxu0 0.0
    %654 = vmatpush1.msra.mxu0 0.0
    %655 = vmatprep.subr.mxu0 0.0
    %656 = vmatpush1.msra.mxu0 0.0
    %657 = vmatprep.subr.mxu0 0.0
    %658 = vmatpush1.msra.mxu0 0.0
    %659 = vmatprep.subr.mxu0 0.0
    %660 = vmatpush1.msra.mxu0 0.0
    %661 = vmatprep.subr.mxu0 0.0
    %662 = vmatpush1.msra.mxu0 0.0
    %663 = vmatprep.subr.mxu0 0.0
    %664 = vmatpush1.msra.mxu0 0.0
    %665 = vmatprep.subr.mxu0 0.0
    %666 = vmatpush1.msra.mxu0 %v167
    %667 = vmatprep.subr.mxu0 0.0
    %668 = vmatpush1.msra.mxu0 %v166
    %669 = vmatprep.subr.mxu0 0.0
    %670 = vmatpush1.msra.mxu0 %v165
    %671 = vmatprep.subr.mxu0 0.0
    %672 = vmatpush1.msra.mxu0 %v164
    %673 = vmatprep.subr.mxu0 0.0
    %674 = vmatpush2.msra.mxu0 0.0
    %675 = vmatprep.subr.mxu0 0.0
    %676 = vmatpush2.msra.mxu0 0.0
    %677 = vmatprep.subr.mxu0 0.0
    %678 = vmatpush2.msra.mxu0 0.0
    %679 = vmatprep.subr.mxu0 0.0
    %680 = vmatpush2.msra.mxu0 0.0
    %681 = vmatprep.subr.mxu0 0.0
    %682 = vmatpush2.msra.mxu0 0.0
    %683 = vmatprep.subr.mxu0 0.0
    %684 = vmatpush2.msra.mxu0 0.0
    %685 = vmatprep.subr.mxu0 0.0
    %686 = vmatpush2.msra.mxu0 0.0
    %687 = vmatprep.subr.mxu0 0.0
    %688 = vmatpush2.msra.mxu0 0.0
    %689 = vmatprep.subr.mxu0 0.0
    %690 = vmatpush2.msra.mxu0 0.0
    %691 = vmatprep.subr.mxu0 0.0
    %692 = vmatpush2.msra.mxu0 0.0
    %693 = vmatprep.subr.mxu0 0.0
    %694 = vmatpush2.msra.mxu0 0.0
    %695 = vmatprep.subr.mxu0 0.0
    %696 = vmatpush2.msra.mxu0 0.0
    %697 = vmatprep.subr.mxu0 0.0
    %698 = vmatpush2.msra.mxu0 0.0
    %699 = vmatprep.subr.mxu0 0.0
    %700 = vmatpush2.msra.mxu0 0.0
    %701 = vmatprep.subr.mxu0 0.0
    %702 = vmatpush2.msra.mxu0 0.0
    %703 = vmatprep.subr.mxu0 0.0
    %704 = vmatpush2.msra.mxu0 0.0
    %705 = vmatprep.mubr.f32.mxu0 0.0
    %706 = vmatmul.mubr.f32.gmra.mxu0 %v639
    %v707 = vpop.f32.mrf.mxu0
    %v708 = vadd.f32 0.0, %v707
    %v709 = vpop.f32.mrf.mxu0
    %710 = vdwg.mxu0
    %v711 = vadd.f32 %v637, %v708
    %v712 = vtanh.pop %v711
    %713 = vst.msk [vmem:[%s636] sm:$0xff] %vm155, %v712
    %s714 = scalar_lea.vmem [#allocation2], 56
    %v715 = vld [vmem:[%s714] sm:$0xff]
    %v717 = vsel %vm155, %v712, 0
    %719 = vmatprep.subr.mxu0 0.0
    %720 = vmatpush1.msra.mxu0 0.0
    %721 = vmatprep.subr.mxu0 0.0
    %722 = vmatpush1.msra.mxu0 0.0
    %723 = vmatprep.subr.mxu0 0.0
    %724 = vmatpush1.msra.mxu0 0.0
    %725 = vmatprep.subr.mxu0 0.0
    %726 = vmatpush1.msra.mxu0 0.0
    %727 = vmatprep.subr.mxu0 0.0
    %728 = vmatpush1.msra.mxu0 0.0
    %729 = vmatprep.subr.mxu0 0.0
    %730 = vmatpush1.msra.mxu0 0.0
    %731 = vmatprep.subr.mxu0 0.0
    %732 = vmatpush1.msra.mxu0 0.0
    %733 = vmatprep.subr.mxu0 0.0
    %734 = vmatpush1.msra.mxu0 0.0
    %735 = vmatprep.subr.mxu0 0.0
    %736 = vmatpush1.msra.mxu0 0.0
    %737 = vmatprep.subr.mxu0 0.0
    %738 = vmatpush1.msra.mxu0 0.0
    %739 = vmatprep.subr.mxu0 0.0
    %740 = vmatpush1.msra.mxu0 0.0
    %741 = vmatprep.subr.mxu0 0.0
    %742 = vmatpush1.msra.mxu0 0.0
    %743 = vmatprep.subr.mxu0 0.0
    %744 = vmatpush1.msra.mxu0 %v167
    %745 = vmatprep.subr.mxu0 0.0
    %746 = vmatpush1.msra.mxu0 %v166
    %747 = vmatprep.subr.mxu0 0.0
    %748 = vmatpush1.msra.mxu0 %v165
    %749 = vmatprep.subr.mxu0 0.0
    %750 = vmatpush1.msra.mxu0 %v164
    %751 = vmatprep.subr.mxu0 0.0
    %752 = vmatpush2.msra.mxu0 0.0
    %753 = vmatprep.subr.mxu0 0.0
    %754 = vmatpush2.msra.mxu0 0.0
    %755 = vmatprep.subr.mxu0 0.0
    %756 = vmatpush2.msra.mxu0 0.0
    %757 = vmatprep.subr.mxu0 0.0
    %758 = vmatpush2.msra.mxu0 0.0
    %759 = vmatprep.subr.mxu0 0.0
    %760 = vmatpush2.msra.mxu0 0.0
    %761 = vmatprep.subr.mxu0 0.0
    %762 = vmatpush2.msra.mxu0 0.0
    %763 = vmatprep.subr.mxu0 0.0
    %764 = vmatpush2.msra.mxu0 0.0
    %765 = vmatprep.subr.mxu0 0.0
    %766 = vmatpush2.msra.mxu0 0.0
    %767 = vmatprep.subr.mxu0 0.0
    %768 = vmatpush2.msra.mxu0 0.0
    %769 = vmatprep.subr.mxu0 0.0
    %770 = vmatpush2.msra.mxu0 0.0
    %771 = vmatprep.subr.mxu0 0.0
    %772 = vmatpush2.msra.mxu0 0.0
    %773 = vmatprep.subr.mxu0 0.0
    %774 = vmatpush2.msra.mxu0 0.0
    %775 = vmatprep.subr.mxu0 0.0
    %776 = vmatpush2.msra.mxu0 0.0
    %777 = vmatprep.subr.mxu0 0.0
    %778 = vmatpush2.msra.mxu0 0.0
    %779 = vmatprep.subr.mxu0 0.0
    %780 = vmatpush2.msra.mxu0 0.0
    %781 = vmatprep.subr.mxu0 0.0
    %782 = vmatpush2.msra.mxu0 0.0
    %783 = vmatprep.mubr.f32.mxu0 0.0
    %784 = vmatmul.mubr.f32.gmra.mxu0 %v717
    %v785 = vpop.f32.mrf.mxu0
    %v786 = vadd.f32 0.0, %v785
    %v787 = vpop.f32.mrf.mxu0
    %788 = vdwg.mxu0
    %v789 = vadd.f32 %v715, %v786
    %v790 = vtanh.pop %v789
    %791 = vst.msk [vmem:[%s714] sm:$0xff] %vm155, %v790
    %792 = vst.msk [vmem:[#allocation12] sm:$0xff] %vm155, %v790
    %v793 = vld [vmem:[#allocation2] sm:$0xff]
    %v794 = vld [vmem:[#allocation2 + $0x8] sm:$0xff]
    %v795 = vld [vmem:[#allocation2 + $0x10] sm:$0xff]
    %v796 = vld [vmem:[#allocation2 + $0x18] sm:$0xff]
    %v797 = vld [vmem:[#allocation2 + $0x20] sm:$0xff]
    %v798 = vld [vmem:[#allocation2 + $0x28] sm:$0xff]
    %v799 = vld [vmem:[#allocation2 + $0x30] sm:$0xff]
    %v800 = vld [vmem:[#allocation2 + $0x38] sm:$0xff]
    %v801 = vlaneseq
    %v802 = vshrl.u32 %v801, 7
    %v803 = vsub.s32 0, %v802
    %v804 = vrot.slane %v72, %v803
    %v805 = vmul.f32 %v793, %v804
    %v806 = vmul.f32 %v794, %v804
    %v807 = vmul.f32 %v795, %v804
    %v808 = vmul.f32 %v796, %v804
    %v809 = vmul.f32 %v797, %v804
    %v810 = vmul.f32 %v798, %v804
    %v811 = vmul.f32 %v799, %v804
    %v812 = vmul.f32 %v800, %v804
    %v813 = vsel %vm155, %v805, 0.0
    %814 = vadd.xlane.f32.xlu0 %v813
    %v815 = vpop.xlane.xlu0 %814
    %v816 = vsel %vm155, %v806, 0.0
    %817 = vadd.xlane.f32.xlu0 %v816
    %v818 = vpop.xlane.xlu0 %817
    %v819 = vsel %vm155, %v807, 0.0
    %820 = vadd.xlane.f32.xlu0 %v819
    %v821 = vpop.xlane.xlu0 %820
    %v822 = vsel %vm155, %v808, 0.0
    %823 = vadd.xlane.f32.xlu0 %v822
    %v824 = vpop.xlane.xlu0 %823
    %v825 = vsel %vm155, %v809, 0.0
    %826 = vadd.xlane.f32.xlu0 %v825
    %v827 = vpop.xlane.xlu0 %826
    %v828 = vsel %vm155, %v810, 0.0
    %829 = vadd.xlane.f32.xlu0 %v828
    %v830 = vpop.xlane.xlu0 %829
    %v831 = vsel %vm155, %v811, 0.0
    %832 = vadd.xlane.f32.xlu0 %v831
    %v833 = vpop.xlane.xlu0 %832
    %v834 = vsel %vm155, %v812, 0.0
    %835 = vadd.xlane.f32.xlu0 %v834
    %v836 = vpop.xlane.xlu0 %835
    %s838 = vtos %v73
    %v839 = vstv %s838
    %v841 = vadd.f32 %v815, %v839
    %v842 = vadd.f32 %v818, %v839
    %v843 = vadd.f32 %v821, %v839
    %v844 = vadd.f32 %v824, %v839
    %v845 = vadd.f32 %v827, %v839
    %v846 = vadd.f32 %v830, %v839
    %v847 = vadd.f32 %v833, %v839
    %v848 = vadd.f32 %v836, %v839
    %v857 = vlaneseq
    %v858 = vand.u32 %v857, 127
    %v859 = vlaneseq
    %v860 = vshrl.u32 %v859, 7
    %v861 = vsub.s32 %v858, %v860
    %v862 = vrot.slane %v841, %v861
    %v863 = vlaneseq
    %v864 = vshrl.u32 %v863, 7
    %v865 = vsub.s32 %v858, %v864
    %v866 = vrot.slane %v842, %v865
    %v867 = vlaneseq
    %v868 = vshrl.u32 %v867, 7
    %v869 = vsub.s32 %v858, %v868
    %v870 = vrot.slane %v843, %v869
    %v871 = vlaneseq
    %v872 = vshrl.u32 %v871, 7
    %v873 = vsub.s32 %v858, %v872
    %v874 = vrot.slane %v844, %v873
    %v875 = vlaneseq
    %v876 = vshrl.u32 %v875, 7
    %v877 = vsub.s32 %v858, %v876
    %v878 = vrot.slane %v845, %v877
    %v879 = vlaneseq
    %v880 = vshrl.u32 %v879, 7
    %v881 = vsub.s32 %v858, %v880
    %v882 = vrot.slane %v846, %v881
    %v883 = vlaneseq
    %v884 = vshrl.u32 %v883, 7
    %v885 = vsub.s32 %v858, %v884
    %v886 = vrot.slane %v847, %v885
    %v887 = vlaneseq
    %v888 = vshrl.u32 %v887, 7
    %v889 = vsub.s32 %v858, %v888
    %v890 = vrot.slane %v848, %v889
    %vm891 = vcmask 1041409
    %v892 = vsel %vm891, %v866, %v862
    %vm893 = vcmask 1042434
    %v894 = vsel %vm893, %v870, %v892
    %vm895 = vcmask 1043459
    %v896 = vsel %vm895, %v874, %v894
    %vm897 = vcmask 1044484
    %v898 = vsel %vm897, %v878, %v896
    %vm899 = vcmask 1045509
    %v900 = vsel %vm899, %v882, %v898
    %vm901 = vcmask 1046534
    %v902 = vsel %vm901, %v886, %v900
    %vm903 = vcmask 1047559
    %v904 = vsel %vm903, %v890, %v902
    %vm906 = vcmask 64512
    %907 = vst.msk [vmem:[#allocation11] sm:$0xff] %vm906, %v904
    // Predicated region
    $region34: #{tpu_custom_call.1} parent=1 // pred_check
      _
    $region35: #{tpu_custom_call.1} parent=1 // pred_check_branch
      %909 = sbr.rel (0) target = $region37
    $region36: #{tpu_custom_call.1} parent=1 // pred_region
      %s911 = ssub.s32 128, 128
      %912 = vsyncadd [#allocation5], %s911
      %s914 = sshll.u32 [#allocation11], 4
      %s915 = int_to_ptr.vmem [resolvable:$true] %s914
      %917 = dma.vmem_to_hbm [thread:$0]  %s915, 128, %s4, [#allocation5]
    $region37: #{tpu_custom_call.1} parent=1 // pred_fallthru
      _
    // Predicated region
    $region38: #{tpu_custom_call.1} parent=1 // pred_check
      _
    $region39: #{tpu_custom_call.1} parent=1 // pred_check_branch
      %919 = sbr.rel (0) target = $region41
    $region40: #{tpu_custom_call.1} parent=1 // pred_region
      %s921 = ssub.s32 128, 128
      %922 = vsyncadd [#allocation13], %s921
      %s924 = sshll.u32 [#allocation12], 4
      %s925 = int_to_ptr.vmem [resolvable:$true] %s924
      %927 = dma.vmem_to_hbm [thread:$0]  %s925, 128, %s5, [#allocation13]
    $region41: #{tpu_custom_call.1} parent=1 // pred_fallthru
      _
    // Predicated region
    $region42: #{tpu_custom_call.1} parent=1 // pred_check
      _
    $region43: #{tpu_custom_call.1} parent=1 // pred_check_branch
      %929 = sbr.rel (0) target = $region45
    $region44: #{tpu_custom_call.1} parent=1 // pred_region
      %930 = dma.done [#allocation5], 128
    $region45: #{tpu_custom_call.1} parent=1 // pred_fallthru
      _
    // Predicated region
    $region46: #{tpu_custom_call.1} parent=1 // pred_check
      _
    $region47: #{tpu_custom_call.1} parent=1 // pred_check_branch
      %932 = sbr.rel (0) target = $region49
    $region48: #{tpu_custom_call.1} parent=1 // pred_region
      %933 = dma.done [#allocation13], 128
    $region49: #{tpu_custom_call.1} parent=1 // pred_fallthru
      _
    %934 = vsyncpa [#allocation4], 1
    %935 = vsyncpa [#allocation7], 1
    %936 = vsyncpa [#allocation10], 1
    %937 = vsyncpa [#allocation5], 1
    %938 = vsyncpa [#allocation13], 1

</llo_original>
